<compile_context>
chip_gen: v7x
topology: tpu7x:2x2x1
jax: 0.10.0
libtpu: 0.0.40
codegen_flags: <defaults>
</compile_context>

<pallas_src>
import jax
import jax.numpy as jnp
from jax import lax
from jax.experimental import pallas as pl
from jax.experimental.pallas import tpu as pltpu


def _self_attention_kernel(q_ref, vals_ref, w1_ref, b1_ref, vw_ref, vb_ref,
                           ctx_ref, score_ref):
    BB, T, in_units = q_ref.shape
    out_units = w1_ref.shape[0]

    # Flatten batch*time so the MXU sees M = BB*T rows.
    q = q_ref[...].astype(jnp.float32).reshape(BB * T, in_units)
    vals = vals_ref[...].astype(jnp.float32)            # [BB, T, Dv]
    w1 = w1_ref[...]                                     # [out, in] (torch layout, f32)
    b1 = b1_ref[...]                                     # [1, out]
    vw = vw_ref[...]                                     # [1, out]
    vb = vb_ref[0]                                       # scalar (SMEM)

    # h = tanh(query @ W1^T + b1); transpose folded into the MXU contraction.
    h = lax.dot_general(q, w1, (((1,), (1,)), ((), ())),
                        preferred_element_type=jnp.float32,
                        precision=lax.Precision.HIGHEST)  # [BB*T, out]
    h = jnp.tanh(h + b1)

    # V projection (out_units -> 1): VPU multiply + lane reduce.
    red = h.reshape(BB, T, out_units) * vw               # [BB, T, out]
    logits = jnp.sum(red, axis=-1, keepdims=True) + vb   # [BB, T, 1]
    score = jax.nn.sigmoid(logits)                       # [BB, T, 1]

    # attention_weights = score / sum_T(score); reciprocal on the EUP slot.
    denom = jnp.sum(score, axis=1, keepdims=True)        # [BB, 1, 1]
    attn = score * pl.reciprocal(denom, approx=True)     # [BB, T, 1]

    # context = sum_T(attn * values): VPU multiply + sublane reduce.
    ctx = jnp.sum(attn * vals, axis=1)                   # [BB, Dv]

    ctx_ref[...] = ctx.astype(ctx_ref.dtype)             # lane-dense (BB, Dv)
    score_ref[...] = score.reshape(BB, T).astype(score_ref.dtype)  # lane-dense (BB, T)


def _choose_block_b(B, T, in_units, Dv):
    """Batch block: fill the MXU M-dim (>=256 rows) while keeping the
    double-buffered per-step input slab a few MiB (fits v7x's 64 MiB VMEM)."""
    target_rows = 256
    bb = pl.cdiv(target_rows, T)
    per_batch_bytes = T * (in_units + Dv) * 4            # f32 query + values rows
    slab_budget = 4 * 1024 * 1024                        # per input buffer copy
    bb = max(1, min(bb, slab_budget // max(per_batch_bytes, 1)))
    if bb >= B:
        return B
    bb = max(8, (bb // 8) * 8)                           # sublane-aligned out blocks
    return min(bb, B)


def self_attention(query, values, w1_weight, w1_bias, v_weight, v_bias,
                   *, block_b=None):
    """Pallas-TPU forward of SelfAttention(in_units, out_units).

    query:     [B, T, in_units]
    values:    [B, T, Dv]
    w1_weight: [out_units, in_units]   (PyTorch nn.Linear layout)
    w1_bias:   [out_units]
    v_weight:  [1, out_units]
    v_bias:    [1]
    Returns (context_vector [B, Dv], score [B, T, 1]).
    """
    B, T, in_units = query.shape
    Dv = values.shape[-1]
    out_units = w1_weight.shape[0]

    if block_b is None:
        block_b = _choose_block_b(B, T, in_units, Dv)

    grid_b = pl.cdiv(B, block_b)
    B_pad = grid_b * block_b
    if B_pad != B:
        # Zero-padding is safe: padded rows produce finite scores (sigmoid of a
        # constant), zero context, and are sliced off below.
        query_p = jnp.pad(query, ((0, B_pad - B), (0, 0), (0, 0)))
        values_p = jnp.pad(values, ((0, B_pad - B), (0, 0), (0, 0)))
    else:
        query_p, values_p = query, values

    # Hoist weight dtype conversion out of the kernel (constant-index blocks).
    w1 = w1_weight.astype(jnp.float32)
    b1 = w1_bias.reshape(1, out_units).astype(jnp.float32)
    vw = v_weight.reshape(1, out_units).astype(jnp.float32)
    vb = v_bias.reshape(1).astype(jnp.float32)           # SMEM scalar

    ctx, score = pl.pallas_call(
        _self_attention_kernel,
        out_shape=(
            jax.ShapeDtypeStruct((B_pad, Dv), jnp.float32),
            jax.ShapeDtypeStruct((B_pad, T), jnp.float32),
        ),
        grid_spec=pltpu.PrefetchScalarGridSpec(
            num_scalar_prefetch=0,
            grid=(grid_b,),
            in_specs=[
                pl.BlockSpec((block_b, T, in_units), lambda b: (b, 0, 0)),  # query
                pl.BlockSpec((block_b, T, Dv), lambda b: (b, 0, 0)),        # values
                pl.BlockSpec((out_units, in_units), lambda b: (0, 0)),      # W1.w
                pl.BlockSpec((1, out_units), lambda b: (0, 0)),             # W1.b
                pl.BlockSpec((1, out_units), lambda b: (0, 0)),             # V.w
                pl.BlockSpec(memory_space=pltpu.MemorySpace.SMEM),          # V.b
            ],
            out_specs=[
                pl.BlockSpec((block_b, Dv), lambda b: (b, 0)),              # context
                pl.BlockSpec((block_b, T), lambda b: (b, 0)),               # score
            ],
        ),
        compiler_params=pltpu.CompilerParams(
            dimension_semantics=("parallel",),
            vmem_limit_bytes=32 * 1024 * 1024,
        ),
    )(query_p, values_p, w1, b1, vw, vb)

    ctx = ctx[:B]
    score = score[:B].reshape(B, T, 1)
    return ctx, score


def _reference(query, values, w1_weight, w1_bias, v_weight, v_bias):
    """Pure-JAX mirror of the PyTorch module, for validation."""
    h = jnp.tanh(
        jnp.einsum("bti,oi->bto", query, w1_weight,
                   precision=lax.Precision.HIGHEST) + w1_bias)
    score = jax.nn.sigmoid(
        jnp.einsum("bto,xo->btx", h, v_weight,
                   precision=lax.Precision.HIGHEST) + v_bias)
    attn = score / jnp.sum(score, axis=1, keepdims=True)
    ctx = jnp.sum(attn * values, axis=1)
    return ctx, score


if __name__ == "__main__":
    # Small, deterministic shapes: batch=2, seq=8, in_units=32, out_units=16, Dv=32
    B, T, in_units, out_units, Dv = 2, 8, 32, 16, 32
    key = jax.random.PRNGKey(0)
    kq, kv, kw1, kb1, kvw, kvb = jax.random.split(key, 6)

    query = jax.random.normal(kq, (B, T, in_units), dtype=jnp.float32)
    values = jax.random.normal(kv, (B, T, Dv), dtype=jnp.float32)
    w1_weight = jax.random.normal(kw1, (out_units, in_units),
                                  dtype=jnp.float32) / jnp.sqrt(float(in_units))
    w1_bias = 0.1 * jax.random.normal(kb1, (out_units,), dtype=jnp.float32)
    v_weight = jax.random.normal(kvw, (1, out_units),
                                 dtype=jnp.float32) / jnp.sqrt(float(out_units))
    v_bias = 0.1 * jax.random.normal(kvb, (1,), dtype=jnp.float32)

    ctx, score = self_attention(query, values, w1_weight, w1_bias,
                                v_weight, v_bias)
    ctx = jax.block_until_ready(ctx)
    score = jax.block_until_ready(score)

    ref_ctx, ref_score = _reference(query, values, w1_weight, w1_bias,
                                    v_weight, v_bias)
    assert ctx.shape == (B, Dv) and score.shape == (B, T, 1)
    # Tolerance slightly loosened for the EUP approximate reciprocal in the
    # normalization (score itself is computed before normalization).
    assert jnp.allclose(ctx, ref_ctx, rtol=2e-3, atol=2e-3), (ctx, ref_ctx)
    assert jnp.allclose(score, ref_score, rtol=2e-3, atol=2e-3), (score, ref_score)

    print("KERNEL_OK")
</pallas_src>

<mosaic_0001>
module attributes {stable_mosaic.version = 11 : i64} {
  func.func @_self_attention_kernel(%arg0: i32, %arg1: memref<2x8x32xf32, #tpu.memory_space<vmem>>, %arg2: memref<2x8x32xf32, #tpu.memory_space<vmem>>, %arg3: memref<16x32xf32, #tpu.memory_space<vmem>>, %arg4: memref<1x16xf32, #tpu.memory_space<vmem>>, %arg5: memref<1x16xf32, #tpu.memory_space<vmem>>, %arg6: memref<1xf32, #tpu.memory_space<smem>>, %arg7: memref<2x32xf32, #tpu.memory_space<vmem>>, %arg8: memref<2x8xf32, #tpu.memory_space<vmem>>) attributes {dimension_semantics = [#tpu.dimension_semantics<parallel>], iteration_bounds = array<i64: 1>, scalar_prefetch = 0 : i64, scratch_operands = 0 : i64, tpu.core_type = #tpu.core_type<tc>, window_params = [{transform_indices = @transform_0, window_bounds = array<i64: 2, 8, 32>}, {transform_indices = @transform_1, window_bounds = array<i64: 2, 8, 32>}, {pipeline_mode = #tpu.pipeline_mode<synchronous>, transform_indices = @transform_2, window_bounds = array<i64: 16, 32>}, {pipeline_mode = #tpu.pipeline_mode<synchronous>, transform_indices = @transform_3, window_bounds = array<i64: 1, 16>}, {pipeline_mode = #tpu.pipeline_mode<synchronous>, transform_indices = @transform_4, window_bounds = array<i64: 1, 16>}, {transform_indices = @transform_5, window_bounds = array<i64: 1>}, {transform_indices = @transform_6, window_bounds = array<i64: 2, 32>}, {transform_indices = @transform_7, window_bounds = array<i64: 2, 8>}]} {
    %c0 = arith.constant 0 : index
    %c0_0 = arith.constant 0 : index
    %c0_1 = arith.constant 0 : index
    %0 = vector.load %arg1[%c0, %c0_0, %c0_1] : memref<2x8x32xf32, #tpu.memory_space<vmem>>, vector<2x8x32xf32>
    %1 = vector.shape_cast %0 : vector<2x8x32xf32> to vector<16x32xf32>
    %c0_2 = arith.constant 0 : index
    %c0_3 = arith.constant 0 : index
    %c0_4 = arith.constant 0 : index
    %2 = vector.load %arg2[%c0_2, %c0_3, %c0_4] : memref<2x8x32xf32, #tpu.memory_space<vmem>>, vector<2x8x32xf32>
    %c0_5 = arith.constant 0 : index
    %c0_6 = arith.constant 0 : index
    %3 = vector.load %arg3[%c0_5, %c0_6] : memref<16x32xf32, #tpu.memory_space<vmem>>, vector<16x32xf32>
    %c0_7 = arith.constant 0 : index
    %c0_8 = arith.constant 0 : index
    %4 = vector.load %arg4[%c0_7, %c0_8] : memref<1x16xf32, #tpu.memory_space<vmem>>, vector<1x16xf32>
    %c0_9 = arith.constant 0 : index
    %c0_10 = arith.constant 0 : index
    %5 = vector.load %arg5[%c0_9, %c0_10] : memref<1x16xf32, #tpu.memory_space<vmem>>, vector<1x16xf32>
    %c0_11 = arith.constant 0 : index
    %6 = memref.load %arg6[%c0_11] : memref<1xf32, #tpu.memory_space<smem>>
    %cst = arith.constant dense<0.000000e+00> : vector<16x16xf32>
    %7 = tpu.matmul %1, %3, %cst {dimension_numbers = #tpu.dot_dimension_numbers<[1], [1], [0], [0], [0, 0, 1, 0], [], []>, precision = #tpu.contract_precision<fp32>} : vector<16x32xf32>, vector<16x32xf32>, vector<16x16xf32> -> vector<16x16xf32>
    %8 = vector.broadcast %4 : vector<1x16xf32> to vector<16x16xf32>
    %9 = arith.addf %7, %8 : vector<16x16xf32>
    %10 = math.tanh %9 : vector<16x16xf32>
    %11 = vector.shape_cast %10 : vector<16x16xf32> to vector<2x8x16xf32>
    %12 = vector.shape_cast %5 : vector<1x16xf32> to vector<1x1x16xf32>
    %13 = vector.broadcast %12 : vector<1x1x16xf32> to vector<2x8x16xf32>
    %14 = arith.mulf %11, %13 : vector<2x8x16xf32>
    %cst_12 = arith.constant dense<0.000000e+00> : vector<2x8xf32>
    %15 = vector.multi_reduction <add>, %14, %cst_12 [2] : vector<2x8x16xf32> to vector<2x8xf32>
    %16 = vector.shape_cast %15 : vector<2x8xf32> to vector<2x8x1xf32>
    %17 = vector.broadcast %6 : f32 to vector<2x8x1xf32>
    %18 = arith.addf %16, %17 : vector<2x8x1xf32>
    %19 = arith.negf %18 : vector<2x8x1xf32>
    %20 = math.exp %19 : vector<2x8x1xf32>
    %cst_13 = arith.constant 1.000000e+00 : f32
    %21 = vector.broadcast %cst_13 : f32 to vector<2x8x1xf32>
    %22 = arith.addf %21, %20 : vector<2x8x1xf32>
    %23 = arith.divf %21, %22 : vector<2x8x1xf32>
    %cst_14 = arith.constant dense<0.000000e+00> : vector<2x1xf32>
    %24 = vector.multi_reduction <add>, %23, %cst_14 [1] : vector<2x8x1xf32> to vector<2x1xf32>
    %25 = vector.shape_cast %24 : vector<2x1xf32> to vector<2x1x1xf32>
    %26 = tpu.reciprocal %25 {approx = true} : vector<2x1x1xf32> -> vector<2x1x1xf32>
    %27 = vector.broadcast %26 : vector<2x1x1xf32> to vector<2x8x1xf32>
    %28 = arith.mulf %23, %27 : vector<2x8x1xf32>
    %29 = vector.broadcast %28 : vector<2x8x1xf32> to vector<2x8x32xf32>
    %30 = arith.mulf %29, %2 : vector<2x8x32xf32>
    %cst_15 = arith.constant dense<0.000000e+00> : vector<2x32xf32>
    %31 = vector.multi_reduction <add>, %30, %cst_15 [1] : vector<2x8x32xf32> to vector<2x32xf32>
    %c0_16 = arith.constant 0 : index
    %c0_17 = arith.constant 0 : index
    %32 = vector.load %arg7[%c0_16, %c0_17] : memref<2x32xf32, #tpu.memory_space<vmem>>, vector<2x32xf32>
    tpu.vector_store %arg7[%c0_16, %c0_17], %31 {strides = array<i32>} : memref<2x32xf32, #tpu.memory_space<vmem>>, vector<2x32xf32>,
    %33 = vector.shape_cast %23 : vector<2x8x1xf32> to vector<2x8xf32>
    %c0_18 = arith.constant 0 : index
    %c0_19 = arith.constant 0 : index
    %34 = vector.load %arg8[%c0_18, %c0_19] : memref<2x8xf32, #tpu.memory_space<vmem>>, vector<2x8xf32>
    tpu.vector_store %arg8[%c0_18, %c0_19], %33 {strides = array<i32>} : memref<2x8xf32, #tpu.memory_space<vmem>>, vector<2x8xf32>,
    return
  }
  func.func @transform_0(%arg0: i32) -> (i32, i32, i32) {
    %c0_i32 = arith.constant 0 : i32
    %c0_i32_0 = arith.constant 0 : i32
    %c0_i32_1 = arith.constant 0 : i32
    return %arg0, %c0_i32, %c0_i32_0 : i32, i32, i32
  }
  func.func @transform_1(%arg0: i32) -> (i32, i32, i32) {
    %c0_i32 = arith.constant 0 : i32
    %c0_i32_0 = arith.constant 0 : i32
    %c0_i32_1 = arith.constant 0 : i32
    return %arg0, %c0_i32, %c0_i32_0 : i32, i32, i32
  }
  func.func @transform_2(%arg0: i32) -> (i32, i32) {
    %c0_i32 = arith.constant 0 : i32
    %c0_i32_0 = arith.constant 0 : i32
    %c0_i32_1 = arith.constant 0 : i32
    return %c0_i32, %c0_i32_0 : i32, i32
  }
  func.func @transform_3(%arg0: i32) -> (i32, i32) {
    %c0_i32 = arith.constant 0 : i32
    %c0_i32_0 = arith.constant 0 : i32
    %c0_i32_1 = arith.constant 0 : i32
    return %c0_i32, %c0_i32_0 : i32, i32
  }
  func.func @transform_4(%arg0: i32) -> (i32, i32) {
    %c0_i32 = arith.constant 0 : i32
    %c0_i32_0 = arith.constant 0 : i32
    %c0_i32_1 = arith.constant 0 : i32
    return %c0_i32, %c0_i32_0 : i32, i32
  }
  func.func @transform_5(%arg0: i32) -> i32 {
    %c0_i32 = arith.constant 0 : i32
    %c0_i32_0 = arith.constant 0 : i32
    return %c0_i32 : i32
  }
  func.func @transform_6(%arg0: i32) -> (i32, i32) {
    %c0_i32 = arith.constant 0 : i32
    %c0_i32_0 = arith.constant 0 : i32
    return %arg0, %c0_i32 : i32, i32
  }
  func.func @transform_7(%arg0: i32) -> (i32, i32) {
    %c0_i32 = arith.constant 0 : i32
    %c0_i32_0 = arith.constant 0 : i32
    return %arg0, %c0_i32 : i32, i32
  }
}

</mosaic_0001>

<llo_original>
// kernel: tpu_custom_call.1
$region0: #{tpu_custom_call.1}
  #allocation0 [shape = 'u32[]', space=smem, size = 0x4, offset = 0x4, fixed_abs, tag = 'smem constant byte address 0x4 - core index']
  #allocation1 [shape = 'u32[144,128]{1,0:T(1,128)}', space=vmem, size = 0x12000, scoped, tag = 'internal scratch']
  #allocation2 [shape = 'f32[1]{0:T(128)S(6)}', space=smem, size = 0x200, scoped, tag = 'scoped memory for tpu_custom_call.1']
  %s0 = inlined_call_operand.hbm [shape: f32[2,8,32], index: 0, kind: input, shape index: {}]
  %s1 = inlined_call_operand.hbm [shape: f32[2,8,32], index: 1, kind: input, shape index: {}]
  %s2 = inlined_call_operand.hbm [shape: f32[16,32], index: 2, kind: input, shape index: {}]
  %s3 = inlined_call_operand.vmem [shape: f32[1,16], index: 3, kind: input, shape index: {}]
  %s4 = inlined_call_operand.vmem [shape: f32[1,16], index: 4, kind: input, shape index: {}]
  %s5 = inlined_call_operand.<no memory space> [shape: f32[1], index: 5, kind: input, shape index: {}]
  %s6 = inlined_call_operand.hbm [shape: f32[2,32], index: 6, kind: output, shape index: {0}]
  %s7 = inlined_call_operand.hbm [shape: f32[2,8], index: 7, kind: output, shape index: {1}]
  %8 = xla_tuple %s6, %s7
  %s9 = sld [smem:[#allocation0]]
  $region54: #{tpu_custom_call.1} parent=0
    _
  %s11 = ssub.s32 1, %s9
  %s12 = scalar_select 0, %s11, %s9
  %13 = sst [smem:[#allocation2]] %s5
  $region1: #{tpu_custom_call.1} parent=0
    #allocation3 [shape = 'u8[8192]{0}', space=vmem, size = 0x2000, scoped, tag = 'input window, operand 0, single buffered']
    #allocation4 [shape = 's32[1]{0}', space=sflag, size = 0x4, scoped, tag = 'scoped memory for tpu_custom_call.1']
    #allocation5 [shape = 's32[1]{0}', space=sflag, size = 0x4, scoped, tag = 'scoped memory for tpu_custom_call.1']
    #allocation6 [shape = 'u8[8192]{0}', space=vmem, size = 0x2000, scoped, tag = 'input window, operand 1, single buffered']
    #allocation7 [shape = 's32[1]{0}', space=sflag, size = 0x4, scoped, tag = 'scoped memory for tpu_custom_call.1']
    #allocation8 [shape = 'u8[8192]{0}', space=vmem, size = 0x2000, scoped, tag = 'input window, operand 2, single buffered']
    #allocation9 [shape = 'u8[1024]{0}', space=vmem, size = 0x400, scoped, tag = 'output window, operand 0, single buffered']
    #allocation10 [shape = 'u8[1024]{0}', space=vmem, size = 0x400, scoped, tag = 'output window, operand 1, single buffered']
    #allocation11 [shape = 's32[1]{0}', space=sflag, size = 0x4, scoped, tag = 'scoped memory for tpu_custom_call.1']
    %14 = vsyncpa [#allocation4], 0
    %15 = vsyncpa [#allocation7], 0
    %16 = vsyncpa [#allocation5], 0
    %17 = vsyncpa [#allocation11], 0
    // Predicated region
    $region2: #{tpu_custom_call.1} parent=1 // pred_check
      _
    $region3: #{tpu_custom_call.1} parent=1 // pred_check_branch
      %19 = sbr.rel (0) target = $region5
    $region4: #{tpu_custom_call.1} parent=1 // pred_region
      %s21 = ssub.s32 256, 256
      %22 = vsyncadd [#allocation4], %s21
      %s23 = sshll.u32 [#allocation3], 4
      %s24 = int_to_ptr.vmem [resolvable:$true] %s23
      %29 = dma.hbm_to_vmem [thread:$0]  %s0, 256, %s24, [#allocation4], 128, 128, 8
    $region5: #{tpu_custom_call.1} parent=1 // pred_fallthru
      _
    // Predicated region
    $region6: #{tpu_custom_call.1} parent=1 // pred_check
      _
    $region7: #{tpu_custom_call.1} parent=1 // pred_check_branch
      %31 = sbr.rel (0) target = $region9
    $region8: #{tpu_custom_call.1} parent=1 // pred_region
      %s33 = ssub.s32 256, 256
      %34 = vsyncadd [#allocation7], %s33
      %s35 = sshll.u32 [#allocation6], 4
      %s36 = int_to_ptr.vmem [resolvable:$true] %s35
      %41 = dma.hbm_to_vmem [thread:$0]  %s1, 256, %s36, [#allocation7], 128, 128, 8
    $region9: #{tpu_custom_call.1} parent=1 // pred_fallthru
      _
    // Predicated region
    $region10: #{tpu_custom_call.1} parent=1 // pred_check
      _
    $region11: #{tpu_custom_call.1} parent=1 // pred_check_branch
      %43 = sbr.rel (0) target = $region13
    $region12: #{tpu_custom_call.1} parent=1 // pred_region
      %s45 = ssub.s32 256, 256
      %46 = vsyncadd [#allocation7], %s45
      %s47 = sshll.u32 [#allocation8], 4
      %s48 = int_to_ptr.vmem [resolvable:$true] %s47
      %53 = dma.hbm_to_vmem [thread:$0]  %s2, 256, %s48, [#allocation7], 128, 128, 8
    $region13: #{tpu_custom_call.1} parent=1 // pred_fallthru
      _
    // Predicated region
    $region14: #{tpu_custom_call.1} parent=1 // pred_check
      _
    $region15: #{tpu_custom_call.1} parent=1 // pred_check_branch
      %55 = sbr.rel (0) target = $region17
    $region16: #{tpu_custom_call.1} parent=1 // pred_region
      _
    $region17: #{tpu_custom_call.1} parent=1 // pred_fallthru
      _
    // Predicated region
    $region18: #{tpu_custom_call.1} parent=1 // pred_check
      _
    $region19: #{tpu_custom_call.1} parent=1 // pred_check_branch
      %57 = sbr.rel (0) target = $region21
    $region20: #{tpu_custom_call.1} parent=1 // pred_region
      _
    $region21: #{tpu_custom_call.1} parent=1 // pred_fallthru
      _
    // Predicated region
    $region22: #{tpu_custom_call.1} parent=1 // pred_check
      _
    $region23: #{tpu_custom_call.1} parent=1 // pred_check_branch
      %59 = sbr.rel (0) target = $region25
    $region24: #{tpu_custom_call.1} parent=1 // pred_region
      _
    $region25: #{tpu_custom_call.1} parent=1 // pred_fallthru
      _
    // Predicated region
    $region26: #{tpu_custom_call.1} parent=1 // pred_check
      _
    $region27: #{tpu_custom_call.1} parent=1 // pred_check_branch
      %61 = sbr.rel (0) target = $region29
    $region28: #{tpu_custom_call.1} parent=1 // pred_region
      %62 = dma.done [#allocation4], 256
    $region29: #{tpu_custom_call.1} parent=1 // pred_fallthru
      _
    // Predicated region
    $region30: #{tpu_custom_call.1} parent=1 // pred_check
      _
    $region31: #{tpu_custom_call.1} parent=1 // pred_check_branch
      %64 = sbr.rel (0) target = $region33
    $region32: #{tpu_custom_call.1} parent=1 // pred_region
      %65 = dma.done [#allocation7], 256
    $region33: #{tpu_custom_call.1} parent=1 // pred_fallthru
      _
    // Predicated region
    $region34: #{tpu_custom_call.1} parent=1 // pred_check
      _
    $region35: #{tpu_custom_call.1} parent=1 // pred_check_branch
      %67 = sbr.rel (0) target = $region37
    $region36: #{tpu_custom_call.1} parent=1 // pred_region
      %68 = dma.done [#allocation7], 256
    $region37: #{tpu_custom_call.1} parent=1 // pred_fallthru
      _
    %v69 = vld [vmem:[#allocation3] sm:$0xff]
    %v70 = vld [vmem:[#allocation3 + $0x8] sm:$0xff]
    %v71 = vld [vmem:[#allocation6] sm:$0xff]
    %v72 = vld [vmem:[#allocation6 + $0x8] sm:$0xff]
    %v73 = vld [vmem:[#allocation8] sm:$0xff]
    %v74 = vld [vmem:[#allocation8 + $0x8] sm:$0xff]
    %v75 = vld [vmem:[%s3] sm:$0x1]
    %v76 = vld [vmem:[%s4] sm:$0x1]
    %s77 = sld [smem:[#allocation2]]
    %v79 = vlaneseq
    %v80 = vshrl.u32 %v79, 7
    %v81 = vsub.s32 0, %v80
    %v82 = vrot.slane %v75, %v81
    %vm84 = vcmask 261120
    %v86 = vsel %vm84, %v69, 0
    %v89 = vsel %vm84, %v70, 0
    %v92 = vsel %vm84, %v73, 0
    %v95 = vsel %vm84, %v74, 0
    %97 = vmatprep.subr.mxu0 0.0
    %v98 = vand.u32 %v92, 4294901760
    %99 = vmatpush1.xpose.msra.mxu0 %v98
    %100 = vmatprep.subr.mxu0 0.0
    %v101 = vand.u32 %v95, 4294901760
    %102 = vmatpush1.xpose.msra.mxu0 %v101
    %103 = vmatprep.subr.mxu0 0.0
    %104 = vmatpush1.xpose.msra.mxu0 0.0
    %105 = vmatprep.subr.mxu0 0.0
    %106 = vmatpush1.xpose.msra.mxu0 0.0
    %107 = vmatprep.subr.mxu0 0.0
    %108 = vmatpush1.xpose.msra.mxu0 0.0
    %109 = vmatprep.subr.mxu0 0.0
    %110 = vmatpush1.xpose.msra.mxu0 0.0
    %111 = vmatprep.subr.mxu0 0.0
    %112 = vmatpush1.xpose.msra.mxu0 0.0
    %113 = vmatprep.subr.mxu0 0.0
    %114 = vmatpush1.xpose.msra.mxu0 0.0
    %115 = vmatprep.subr.mxu0 0.0
    %116 = vmatpush1.xpose.msra.mxu0 0.0
    %117 = vmatprep.subr.mxu0 0.0
    %118 = vmatpush1.xpose.msra.mxu0 0.0
    %119 = vmatprep.subr.mxu0 0.0
    %120 = vmatpush1.xpose.msra.mxu0 0.0
    %121 = vmatprep.subr.mxu0 0.0
    %122 = vmatpush1.xpose.msra.mxu0 0.0
    %123 = vmatprep.subr.mxu0 0.0
    %124 = vmatpush1.xpose.msra.mxu0 0.0
    %125 = vmatprep.subr.mxu0 0.0
    %126 = vmatpush1.xpose.msra.mxu0 0.0
    %127 = vmatprep.subr.mxu0 0.0
    %128 = vmatpush1.xpose.msra.mxu0 0.0
    %129 = vmatprep.subr.mxu0 0.0
    %130 = vmatpush1.xpose.msra.mxu0 0.0
    %131 = vmatprep.subr.mxu0 0.0
    %132 = vmatpush1.xpose.msra.mxu0 0.0
    %133 = vmatprep.subr.mxu0 0.0
    %134 = vmatpush1.xpose.msra.mxu0 0.0
    %135 = vmatprep.subr.mxu0 0.0
    %136 = vmatpush1.xpose.msra.mxu0 0.0
    %137 = vmatprep.subr.mxu0 0.0
    %138 = vmatpush1.xpose.msra.mxu0 0.0
    %139 = vmatprep.subr.mxu0 0.0
    %140 = vmatpush1.xpose.msra.mxu0 0.0
    %141 = vmatprep.subr.mxu0 0.0
    %142 = vmatpush1.xpose.msra.mxu0 0.0
    %143 = vmatprep.subr.mxu0 0.0
    %144 = vmatpush1.xpose.msra.mxu0 0.0
    %145 = vmatprep.subr.mxu0 0.0
    %146 = vmatpush1.xpose.msra.mxu0 0.0
    %147 = vmatprep.subr.mxu0 0.0
    %148 = vmatpush1.xpose.msra.mxu0 0.0
    %149 = vmatprep.subr.mxu0 0.0
    %150 = vmatpush1.xpose.msra.mxu0 0.0
    %151 = vmatprep.subr.mxu0 0.0
    %152 = vmatpush1.xpose.msra.mxu0 0.0
    %153 = vmatprep.subr.mxu0 0.0
    %154 = vmatpush1.xpose.msra.mxu0 0.0
    %155 = vmatprep.subr.mxu0 0.0
    %156 = vmatpush1.xpose.msra.mxu0 0.0
    %157 = vmatprep.subr.mxu0 0.0
    %158 = vmatpush1.xpose.msra.mxu0 0.0
    %159 = vmatprep.subr.mxu0 0.0
    %160 = vmatpush1.xpose.msra.mxu0 0.0
    %161 = vmatprep.subr.mxu0 0.0
    %162 = vmatpush1.xpose.msra.mxu0 0.0
    %163 = vmatprep.mubr.f32.mxu0 0.0
    %v164 = vand.u32 %v86, 4294901760
    %v165 = vsub.f32 %v86, %v164
    %v166 = vand.u32 %v165, 4294901760
    %v167 = vsub.f32 %v165, %v166
    %v168 = vand.u32 %v167, 4294901760
    %169 = vmatmul.mubr.f32.gmra.mrb[0].mxu0 %v168
    %v170 = vpop.f32.mrb[0].mxu0
    %v171 = vadd.f32 %v82, %v170
    %v172 = vpop.f32.mrb[0].mxu0
    %173 = vmatprep.mubr.f32.mxu0 0.0
    %v174 = vand.u32 %v89, 4294901760
    %v175 = vsub.f32 %v89, %v174
    %v176 = vand.u32 %v175, 4294901760
    %v177 = vsub.f32 %v175, %v176
    %v178 = vand.u32 %v177, 4294901760
    %179 = vmatmul.mubr.f32.gmra.mrb[0].mxu0 %v178
    %v180 = vpop.f32.mrb[0].mxu0
    %v181 = vadd.f32 %v82, %v180
    %v182 = vpop.f32.mrb[0].mxu0
    %183 = vdwg.mxu0
    %184 = vmatprep.subr.mxu0 0.0
    %v185 = vand.u32 %v92, 4294901760
    %v186 = vsub.f32 %v92, %v185
    %v187 = vand.u32 %v186, 4294901760
    %v188 = vsub.f32 %v186, %v187
    %v189 = vand.u32 %v188, 4294901760
    %190 = vmatpush1.xpose.msra.mxu0 %v189
    %191 = vmatprep.subr.mxu0 0.0
    %v192 = vand.u32 %v95, 4294901760
    %v193 = vsub.f32 %v95, %v192
    %v194 = vand.u32 %v193, 4294901760
    %v195 = vsub.f32 %v193, %v194
    %v196 = vand.u32 %v195, 4294901760
    %197 = vmatpush1.xpose.msra.mxu0 %v196
    %198 = vmatprep.subr.mxu0 0.0
    %199 = vmatpush1.xpose.msra.mxu0 0.0
    %200 = vmatprep.subr.mxu0 0.0
    %201 = vmatpush1.xpose.msra.mxu0 0.0
    %202 = vmatprep.subr.mxu0 0.0
    %203 = vmatpush1.xpose.msra.mxu0 0.0
    %204 = vmatprep.subr.mxu0 0.0
    %205 = vmatpush1.xpose.msra.mxu0 0.0
    %206 = vmatprep.subr.mxu0 0.0
    %207 = vmatpush1.xpose.msra.mxu0 0.0
    %208 = vmatprep.subr.mxu0 0.0
    %209 = vmatpush1.xpose.msra.mxu0 0.0
    %210 = vmatprep.subr.mxu0 0.0
    %211 = vmatpush1.xpose.msra.mxu0 0.0
    %212 = vmatprep.subr.mxu0 0.0
    %213 = vmatpush1.xpose.msra.mxu0 0.0
    %214 = vmatprep.subr.mxu0 0.0
    %215 = vmatpush1.xpose.msra.mxu0 0.0
    %216 = vmatprep.subr.mxu0 0.0
    %217 = vmatpush1.xpose.msra.mxu0 0.0
    %218 = vmatprep.subr.mxu0 0.0
    %219 = vmatpush1.xpose.msra.mxu0 0.0
    %220 = vmatprep.subr.mxu0 0.0
    %221 = vmatpush1.xpose.msra.mxu0 0.0
    %222 = vmatprep.subr.mxu0 0.0
    %223 = vmatpush1.xpose.msra.mxu0 0.0
    %224 = vmatprep.subr.mxu0 0.0
    %225 = vmatpush1.xpose.msra.mxu0 0.0
    %226 = vmatprep.subr.mxu0 0.0
    %227 = vmatpush1.xpose.msra.mxu0 0.0
    %228 = vmatprep.subr.mxu0 0.0
    %229 = vmatpush1.xpose.msra.mxu0 0.0
    %230 = vmatprep.subr.mxu0 0.0
    %231 = vmatpush1.xpose.msra.mxu0 0.0
    %232 = vmatprep.subr.mxu0 0.0
    %233 = vmatpush1.xpose.msra.mxu0 0.0
    %234 = vmatprep.subr.mxu0 0.0
    %235 = vmatpush1.xpose.msra.mxu0 0.0
    %236 = vmatprep.subr.mxu0 0.0
    %237 = vmatpush1.xpose.msra.mxu0 0.0
    %238 = vmatprep.subr.mxu0 0.0
    %239 = vmatpush1.xpose.msra.mxu0 0.0
    %240 = vmatprep.subr.mxu0 0.0
    %241 = vmatpush1.xpose.msra.mxu0 0.0
    %242 = vmatprep.subr.mxu0 0.0
    %243 = vmatpush1.xpose.msra.mxu0 0.0
    %244 = vmatprep.subr.mxu0 0.0
    %245 = vmatpush1.xpose.msra.mxu0 0.0
    %246 = vmatprep.subr.mxu0 0.0
    %247 = vmatpush1.xpose.msra.mxu0 0.0
    %248 = vmatprep.subr.mxu0 0.0
    %249 = vmatpush1.xpose.msra.mxu0 0.0
    %250 = vmatprep.subr.mxu0 0.0
    %251 = vmatpush1.xpose.msra.mxu0 0.0
    %252 = vmatprep.subr.mxu0 0.0
    %253 = vmatpush1.xpose.msra.mxu0 0.0
    %254 = vmatprep.subr.mxu0 0.0
    %255 = vmatpush1.xpose.msra.mxu0 0.0
    %256 = vmatprep.subr.mxu0 0.0
    %257 = vmatpush1.xpose.msra.mxu0 0.0
    %258 = vmatprep.mubr.f32.mxu0 0.0
    %v259 = vand.u32 %v86, 4294901760
    %260 = vmatmul.mubr.f32.gmra.mrb[0].mxu0 %v259
    %v261 = vpop.f32.mrb[0].mxu0
    %v262 = vadd.f32 %v171, %v261
    %v263 = vpop.f32.mrb[0].mxu0
    %264 = vmatprep.mubr.f32.mxu0 0.0
    %v265 = vand.u32 %v89, 4294901760
    %266 = vmatmul.mubr.f32.gmra.mrb[0].mxu0 %v265
    %v267 = vpop.f32.mrb[0].mxu0
    %v268 = vadd.f32 %v181, %v267
    %v269 = vpop.f32.mrb[0].mxu0
    %270 = vdwg.mxu0
    %271 = vmatprep.subr.mxu0 0.0
    %v272 = vand.u32 %v92, 4294901760
    %v273 = vsub.f32 %v92, %v272
    %274 = vmatpush1.xpose.msra.mxu0 %v273
    %275 = vmatprep.subr.mxu0 0.0
    %v276 = vand.u32 %v95, 4294901760
    %v277 = vsub.f32 %v95, %v276
    %278 = vmatpush1.xpose.msra.mxu0 %v277
    %279 = vmatprep.subr.mxu0 0.0
    %280 = vmatpush1.xpose.msra.mxu0 0.0
    %281 = vmatprep.subr.mxu0 0.0
    %282 = vmatpush1.xpose.msra.mxu0 0.0
    %283 = vmatprep.subr.mxu0 0.0
    %284 = vmatpush1.xpose.msra.mxu0 0.0
    %285 = vmatprep.subr.mxu0 0.0
    %286 = vmatpush1.xpose.msra.mxu0 0.0
    %287 = vmatprep.subr.mxu0 0.0
    %288 = vmatpush1.xpose.msra.mxu0 0.0
    %289 = vmatprep.subr.mxu0 0.0
    %290 = vmatpush1.xpose.msra.mxu0 0.0
    %291 = vmatprep.subr.mxu0 0.0
    %292 = vmatpush1.xpose.msra.mxu0 0.0
    %293 = vmatprep.subr.mxu0 0.0
    %294 = vmatpush1.xpose.msra.mxu0 0.0
    %295 = vmatprep.subr.mxu0 0.0
    %296 = vmatpush1.xpose.msra.mxu0 0.0
    %297 = vmatprep.subr.mxu0 0.0
    %298 = vmatpush1.xpose.msra.mxu0 0.0
    %299 = vmatprep.subr.mxu0 0.0
    %300 = vmatpush1.xpose.msra.mxu0 0.0
    %301 = vmatprep.subr.mxu0 0.0
    %302 = vmatpush1.xpose.msra.mxu0 0.0
    %303 = vmatprep.subr.mxu0 0.0
    %304 = vmatpush1.xpose.msra.mxu0 0.0
    %305 = vmatprep.subr.mxu0 0.0
    %306 = vmatpush1.xpose.msra.mxu0 0.0
    %307 = vmatprep.subr.mxu0 0.0
    %308 = vmatpush1.xpose.msra.mxu0 0.0
    %309 = vmatprep.subr.mxu0 0.0
    %310 = vmatpush1.xpose.msra.mxu0 0.0
    %311 = vmatprep.subr.mxu0 0.0
    %312 = vmatpush1.xpose.msra.mxu0 0.0
    %313 = vmatprep.subr.mxu0 0.0
    %314 = vmatpush1.xpose.msra.mxu0 0.0
    %315 = vmatprep.subr.mxu0 0.0
    %316 = vmatpush1.xpose.msra.mxu0 0.0
    %317 = vmatprep.subr.mxu0 0.0
    %318 = vmatpush1.xpose.msra.mxu0 0.0
    %319 = vmatprep.subr.mxu0 0.0
    %320 = vmatpush1.xpose.msra.mxu0 0.0
    %321 = vmatprep.subr.mxu0 0.0
    %322 = vmatpush1.xpose.msra.mxu0 0.0
    %323 = vmatprep.subr.mxu0 0.0
    %324 = vmatpush1.xpose.msra.mxu0 0.0
    %325 = vmatprep.subr.mxu0 0.0
    %326 = vmatpush1.xpose.msra.mxu0 0.0
    %327 = vmatprep.subr.mxu0 0.0
    %328 = vmatpush1.xpose.msra.mxu0 0.0
    %329 = vmatprep.subr.mxu0 0.0
    %330 = vmatpush1.xpose.msra.mxu0 0.0
    %331 = vmatprep.subr.mxu0 0.0
    %332 = vmatpush1.xpose.msra.mxu0 0.0
    %333 = vmatprep.subr.mxu0 0.0
    %334 = vmatpush1.xpose.msra.mxu0 0.0
    %335 = vmatprep.subr.mxu0 0.0
    %336 = vmatpush1.xpose.msra.mxu0 0.0
    %337 = vmatprep.subr.mxu0 0.0
    %338 = vmatpush1.xpose.msra.mxu0 0.0
    %339 = vmatprep.mubr.f32.mxu0 0.0
    %v340 = vand.u32 %v86, 4294901760
    %v341 = vsub.f32 %v86, %v340
    %342 = vmatmul.mubr.f32.gmra.mrb[0].mxu0 %v341
    %v343 = vpop.f32.mrb[0].mxu0
    %v344 = vadd.f32 %v262, %v343
    %v345 = vpop.f32.mrb[0].mxu0
    %346 = vmatprep.mubr.f32.mxu0 0.0
    %v347 = vand.u32 %v89, 4294901760
    %v348 = vsub.f32 %v89, %v347
    %349 = vmatmul.mubr.f32.gmra.mrb[0].mxu0 %v348
    %v350 = vpop.f32.mrb[0].mxu0
    %v351 = vadd.f32 %v268, %v350
    %v352 = vpop.f32.mrb[0].mxu0
    %353 = vdwg.mxu0
    %354 = vmatprep.subr.mxu0 0.0
    %v355 = vand.u32 %v92, 4294901760
    %356 = vmatpush1.xpose.msra.mxu0 %v355
    %357 = vmatprep.subr.mxu0 0.0
    %v358 = vand.u32 %v95, 4294901760
    %359 = vmatpush1.xpose.msra.mxu0 %v358
    %360 = vmatprep.subr.mxu0 0.0
    %361 = vmatpush1.xpose.msra.mxu0 0.0
    %362 = vmatprep.subr.mxu0 0.0
    %363 = vmatpush1.xpose.msra.mxu0 0.0
    %364 = vmatprep.subr.mxu0 0.0
    %365 = vmatpush1.xpose.msra.mxu0 0.0
    %366 = vmatprep.subr.mxu0 0.0
    %367 = vmatpush1.xpose.msra.mxu0 0.0
    %368 = vmatprep.subr.mxu0 0.0
    %369 = vmatpush1.xpose.msra.mxu0 0.0
    %370 = vmatprep.subr.mxu0 0.0
    %371 = vmatpush1.xpose.msra.mxu0 0.0
    %372 = vmatprep.subr.mxu0 0.0
    %373 = vmatpush1.xpose.msra.mxu0 0.0
    %374 = vmatprep.subr.mxu0 0.0
    %375 = vmatpush1.xpose.msra.mxu0 0.0
    %376 = vmatprep.subr.mxu0 0.0
    %377 = vmatpush1.xpose.msra.mxu0 0.0
    %378 = vmatprep.subr.mxu0 0.0
    %379 = vmatpush1.xpose.msra.mxu0 0.0
    %380 = vmatprep.subr.mxu0 0.0
    %381 = vmatpush1.xpose.msra.mxu0 0.0
    %382 = vmatprep.subr.mxu0 0.0
    %383 = vmatpush1.xpose.msra.mxu0 0.0
    %384 = vmatprep.subr.mxu0 0.0
    %385 = vmatpush1.xpose.msra.mxu0 0.0
    %386 = vmatprep.subr.mxu0 0.0
    %387 = vmatpush1.xpose.msra.mxu0 0.0
    %388 = vmatprep.subr.mxu0 0.0
    %389 = vmatpush1.xpose.msra.mxu0 0.0
    %390 = vmatprep.subr.mxu0 0.0
    %391 = vmatpush1.xpose.msra.mxu0 0.0
    %392 = vmatprep.subr.mxu0 0.0
    %393 = vmatpush1.xpose.msra.mxu0 0.0
    %394 = vmatprep.subr.mxu0 0.0
    %395 = vmatpush1.xpose.msra.mxu0 0.0
    %396 = vmatprep.subr.mxu0 0.0
    %397 = vmatpush1.xpose.msra.mxu0 0.0
    %398 = vmatprep.subr.mxu0 0.0
    %399 = vmatpush1.xpose.msra.mxu0 0.0
    %400 = vmatprep.subr.mxu0 0.0
    %401 = vmatpush1.xpose.msra.mxu0 0.0
    %402 = vmatprep.subr.mxu0 0.0
    %403 = vmatpush1.xpose.msra.mxu0 0.0
    %404 = vmatprep.subr.mxu0 0.0
    %405 = vmatpush1.xpose.msra.mxu0 0.0
    %406 = vmatprep.subr.mxu0 0.0
    %407 = vmatpush1.xpose.msra.mxu0 0.0
    %408 = vmatprep.subr.mxu0 0.0
    %409 = vmatpush1.xpose.msra.mxu0 0.0
    %410 = vmatprep.subr.mxu0 0.0
    %411 = vmatpush1.xpose.msra.mxu0 0.0
    %412 = vmatprep.subr.mxu0 0.0
    %413 = vmatpush1.xpose.msra.mxu0 0.0
    %414 = vmatprep.subr.mxu0 0.0
    %415 = vmatpush1.xpose.msra.mxu0 0.0
    %416 = vmatprep.subr.mxu0 0.0
    %417 = vmatpush1.xpose.msra.mxu0 0.0
    %418 = vmatprep.subr.mxu0 0.0
    %419 = vmatpush1.xpose.msra.mxu0 0.0
    %420 = vmatprep.mubr.f32.mxu0 0.0
    %v421 = vand.u32 %v86, 4294901760
    %v422 = vsub.f32 %v86, %v421
    %v423 = vand.u32 %v422, 4294901760
    %424 = vmatmul.mubr.f32.gmra.mrb[0].mxu0 %v423
    %v425 = vpop.f32.mrb[0].mxu0
    %v426 = vadd.f32 %v344, %v425
    %v427 = vpop.f32.mrb[0].mxu0
    %428 = vmatprep.mubr.f32.mxu0 0.0
    %v429 = vand.u32 %v89, 4294901760
    %v430 = vsub.f32 %v89, %v429
    %v431 = vand.u32 %v430, 4294901760
    %432 = vmatmul.mubr.f32.gmra.mrb[0].mxu0 %v431
    %v433 = vpop.f32.mrb[0].mxu0
    %v434 = vadd.f32 %v351, %v433
    %v435 = vpop.f32.mrb[0].mxu0
    %436 = vdwg.mxu0
    %437 = vmatprep.subr.mxu0 0.0
    %v438 = vand.u32 %v92, 4294901760
    %v439 = vsub.f32 %v92, %v438
    %v440 = vand.u32 %v439, 4294901760
    %441 = vmatpush1.xpose.msra.mxu0 %v440
    %442 = vmatprep.subr.mxu0 0.0
    %v443 = vand.u32 %v95, 4294901760
    %v444 = vsub.f32 %v95, %v443
    %v445 = vand.u32 %v444, 4294901760
    %446 = vmatpush1.xpose.msra.mxu0 %v445
    %447 = vmatprep.subr.mxu0 0.0
    %448 = vmatpush1.xpose.msra.mxu0 0.0
    %449 = vmatprep.subr.mxu0 0.0
    %450 = vmatpush1.xpose.msra.mxu0 0.0
    %451 = vmatprep.subr.mxu0 0.0
    %452 = vmatpush1.xpose.msra.mxu0 0.0
    %453 = vmatprep.subr.mxu0 0.0
    %454 = vmatpush1.xpose.msra.mxu0 0.0
    %455 = vmatprep.subr.mxu0 0.0
    %456 = vmatpush1.xpose.msra.mxu0 0.0
    %457 = vmatprep.subr.mxu0 0.0
    %458 = vmatpush1.xpose.msra.mxu0 0.0
    %459 = vmatprep.subr.mxu0 0.0
    %460 = vmatpush1.xpose.msra.mxu0 0.0
    %461 = vmatprep.subr.mxu0 0.0
    %462 = vmatpush1.xpose.msra.mxu0 0.0
    %463 = vmatprep.subr.mxu0 0.0
    %464 = vmatpush1.xpose.msra.mxu0 0.0
    %465 = vmatprep.subr.mxu0 0.0
    %466 = vmatpush1.xpose.msra.mxu0 0.0
    %467 = vmatprep.subr.mxu0 0.0
    %468 = vmatpush1.xpose.msra.mxu0 0.0
    %469 = vmatprep.subr.mxu0 0.0
    %470 = vmatpush1.xpose.msra.mxu0 0.0
    %471 = vmatprep.subr.mxu0 0.0
    %472 = vmatpush1.xpose.msra.mxu0 0.0
    %473 = vmatprep.subr.mxu0 0.0
    %474 = vmatpush1.xpose.msra.mxu0 0.0
    %475 = vmatprep.subr.mxu0 0.0
    %476 = vmatpush1.xpose.msra.mxu0 0.0
    %477 = vmatprep.subr.mxu0 0.0
    %478 = vmatpush1.xpose.msra.mxu0 0.0
    %479 = vmatprep.subr.mxu0 0.0
    %480 = vmatpush1.xpose.msra.mxu0 0.0
    %481 = vmatprep.subr.mxu0 0.0
    %482 = vmatpush1.xpose.msra.mxu0 0.0
    %483 = vmatprep.subr.mxu0 0.0
    %484 = vmatpush1.xpose.msra.mxu0 0.0
    %485 = vmatprep.subr.mxu0 0.0
    %486 = vmatpush1.xpose.msra.mxu0 0.0
    %487 = vmatprep.subr.mxu0 0.0
    %488 = vmatpush1.xpose.msra.mxu0 0.0
    %489 = vmatprep.subr.mxu0 0.0
    %490 = vmatpush1.xpose.msra.mxu0 0.0
    %491 = vmatprep.subr.mxu0 0.0
    %492 = vmatpush1.xpose.msra.mxu0 0.0
    %493 = vmatprep.subr.mxu0 0.0
    %494 = vmatpush1.xpose.msra.mxu0 0.0
    %495 = vmatprep.subr.mxu0 0.0
    %496 = vmatpush1.xpose.msra.mxu0 0.0
    %497 = vmatprep.subr.mxu0 0.0
    %498 = vmatpush1.xpose.msra.mxu0 0.0
    %499 = vmatprep.subr.mxu0 0.0
    %500 = vmatpush1.xpose.msra.mxu0 0.0
    %501 = vmatprep.subr.mxu0 0.0
    %502 = vmatpush1.xpose.msra.mxu0 0.0
    %503 = vmatprep.subr.mxu0 0.0
    %504 = vmatpush1.xpose.msra.mxu0 0.0
    %505 = vmatprep.subr.mxu0 0.0
    %506 = vmatpush1.xpose.msra.mxu0 0.0
    %507 = vmatprep.mubr.f32.mxu0 0.0
    %v508 = vand.u32 %v86, 4294901760
    %509 = vmatmul.mubr.f32.gmra.mrb[0].mxu0 %v508
    %v510 = vpop.f32.mrb[0].mxu0
    %v511 = vadd.f32 %v426, %v510
    %v512 = vpop.f32.mrb[0].mxu0
    %513 = vmatprep.mubr.f32.mxu0 0.0
    %v514 = vand.u32 %v89, 4294901760
    %515 = vmatmul.mubr.f32.gmra.mrb[0].mxu0 %v514
    %v516 = vpop.f32.mrb[0].mxu0
    %v517 = vadd.f32 %v434, %v516
    %v518 = vpop.f32.mrb[0].mxu0
    %519 = vdwg.mxu0
    %520 = vmatprep.subr.mxu0 0.0
    %v521 = vand.u32 %v92, 4294901760
    %522 = vmatpush1.xpose.msra.mxu0 %v521
    %523 = vmatprep.subr.mxu0 0.0
    %v524 = vand.u32 %v95, 4294901760
    %525 = vmatpush1.xpose.msra.mxu0 %v524
    %526 = vmatprep.subr.mxu0 0.0
    %527 = vmatpush1.xpose.msra.mxu0 0.0
    %528 = vmatprep.subr.mxu0 0.0
    %529 = vmatpush1.xpose.msra.mxu0 0.0
    %530 = vmatprep.subr.mxu0 0.0
    %531 = vmatpush1.xpose.msra.mxu0 0.0
    %532 = vmatprep.subr.mxu0 0.0
    %533 = vmatpush1.xpose.msra.mxu0 0.0
    %534 = vmatprep.subr.mxu0 0.0
    %535 = vmatpush1.xpose.msra.mxu0 0.0
    %536 = vmatprep.subr.mxu0 0.0
    %537 = vmatpush1.xpose.msra.mxu0 0.0
    %538 = vmatprep.subr.mxu0 0.0
    %539 = vmatpush1.xpose.msra.mxu0 0.0
    %540 = vmatprep.subr.mxu0 0.0
    %541 = vmatpush1.xpose.msra.mxu0 0.0
    %542 = vmatprep.subr.mxu0 0.0
    %543 = vmatpush1.xpose.msra.mxu0 0.0
    %544 = vmatprep.subr.mxu0 0.0
    %545 = vmatpush1.xpose.msra.mxu0 0.0
    %546 = vmatprep.subr.mxu0 0.0
    %547 = vmatpush1.xpose.msra.mxu0 0.0
    %548 = vmatprep.subr.mxu0 0.0
    %549 = vmatpush1.xpose.msra.mxu0 0.0
    %550 = vmatprep.subr.mxu0 0.0
    %551 = vmatpush1.xpose.msra.mxu0 0.0
    %552 = vmatprep.subr.mxu0 0.0
    %553 = vmatpush1.xpose.msra.mxu0 0.0
    %554 = vmatprep.subr.mxu0 0.0
    %555 = vmatpush1.xpose.msra.mxu0 0.0
    %556 = vmatprep.subr.mxu0 0.0
    %557 = vmatpush1.xpose.msra.mxu0 0.0
    %558 = vmatprep.subr.mxu0 0.0
    %559 = vmatpush1.xpose.msra.mxu0 0.0
    %560 = vmatprep.subr.mxu0 0.0
    %561 = vmatpush1.xpose.msra.mxu0 0.0
    %562 = vmatprep.subr.mxu0 0.0
    %563 = vmatpush1.xpose.msra.mxu0 0.0
    %564 = vmatprep.subr.mxu0 0.0
    %565 = vmatpush1.xpose.msra.mxu0 0.0
    %566 = vmatprep.subr.mxu0 0.0
    %567 = vmatpush1.xpose.msra.mxu0 0.0
    %568 = vmatprep.subr.mxu0 0.0
    %569 = vmatpush1.xpose.msra.mxu0 0.0
    %570 = vmatprep.subr.mxu0 0.0
    %571 = vmatpush1.xpose.msra.mxu0 0.0
    %572 = vmatprep.subr.mxu0 0.0
    %573 = vmatpush1.xpose.msra.mxu0 0.0
    %574 = vmatprep.subr.mxu0 0.0
    %575 = vmatpush1.xpose.msra.mxu0 0.0
    %576 = vmatprep.subr.mxu0 0.0
    %577 = vmatpush1.xpose.msra.mxu0 0.0
    %578 = vmatprep.subr.mxu0 0.0
    %579 = vmatpush1.xpose.msra.mxu0 0.0
    %580 = vmatprep.subr.mxu0 0.0
    %581 = vmatpush1.xpose.msra.mxu0 0.0
    %582 = vmatprep.subr.mxu0 0.0
    %583 = vmatpush1.xpose.msra.mxu0 0.0
    %584 = vmatprep.subr.mxu0 0.0
    %585 = vmatpush1.xpose.msra.mxu0 0.0
    %586 = vmatprep.mubr.f32.mxu0 0.0
    %v587 = vand.u32 %v86, 4294901760
    %588 = vmatmul.mubr.f32.gmra.mrb[0].mxu0 %v587
    %v589 = vpop.f32.mrb[0].mxu0
    %v590 = vadd.f32 %v511, %v589
    %v591 = vpop.f32.mrb[0].mxu0
    %592 = vmatprep.mubr.f32.mxu0 0.0
    %v593 = vand.u32 %v89, 4294901760
    %594 = vmatmul.mubr.f32.gmra.mrb[0].mxu0 %v593
    %v595 = vpop.f32.mrb[0].mxu0
    %v596 = vadd.f32 %v517, %v595
    %v597 = vpop.f32.mrb[0].mxu0
    %598 = vdwg.mxu0
    %v599 = vtanh.pop %v590
    %v600 = vtanh.pop %v596
    %v602 = vlaneseq
    %v603 = vshrl.u32 %v602, 7
    %v604 = vsub.s32 0, %v603
    %v605 = vrot.slane %v76, %v604
    %v607 = vmul.f32 %v599, %v605
    %v608 = vmul.f32 %v600, %v605
    %vm609 = vcmask 130048
    %v610 = vsel %vm609, %v607, 0.0
    %611 = vadd.xlane.f32.xlu0 %v610
    %v612 = vpop.xlane.xlu0 %611
    %v613 = vsel %vm609, %v608, 0.0
    %614 = vadd.xlane.f32.xlu0 %v613
    %v615 = vpop.xlane.xlu0 %614
    %v616 = vstv %s77
    %v617 = vadd.f32 %v612, %v616
    %v618 = vadd.f32 %v615, %v616
    %v619 = vxor.u32 %v617, 2147483648
    %v620 = vxor.u32 %v618, 2147483648
    %v621 = vmul.f32 %v619, 1.442695
    %v622 = vpow.pop %v621
    %v623 = vmul.f32 %v620, 1.442695
    %v624 = vpow.pop %v623
    %v625 = vadd.f32 %v622, 1.0
    %v626 = vadd.f32 %v624, 1.0
    %v627 = vrcp.pop %v625
    %v628 = vmul.f32 1.0, %v627
    %v629 = vrcp.pop %v626
    %v630 = vmul.f32 1.0, %v629
    %v631 = vrot.slane %v628, 4
    %v632 = vadd.f32 %v628, %v631
    %v633 = vrot.slane %v632, 2
    %v634 = vadd.f32 %v632, %v633
    %v635 = vrot.slane %v634, 1
    %v636 = vadd.f32 %v634, %v635
    %v637 = vrot.slane %v630, 4
    %v638 = vadd.f32 %v630, %v637
    %v639 = vrot.slane %v638, 2
    %v640 = vadd.f32 %v638, %v639
    %v641 = vrot.slane %v640, 1
    %v642 = vadd.f32 %v640, %v641
    %v643 = vrcp.pop %v636
    %v644 = vrcp.pop %v642
    %v645 = vmul.f32 %v628, %v643
    %v646 = vmul.f32 %v630, %v644
    %v647 = vmul.f32 %v645, %v71
    %v648 = vmul.f32 %v646, %v72
    %v649 = vsel %vm84, %v647, 0.0
    %v650 = vrot.slane %v649, 4
    %v651 = vadd.f32 %v649, %v650
    %v652 = vrot.slane %v651, 2
    %v653 = vadd.f32 %v651, %v652
    %v654 = vrot.slane %v653, 1
    %v655 = vadd.f32 %v653, %v654
    %v656 = vsel %vm84, %v648, 0.0
    %v657 = vrot.slane %v656, 4
    %v658 = vadd.f32 %v656, %v657
    %v659 = vrot.slane %v658, 2
    %v660 = vadd.f32 %v658, %v659
    %v661 = vrot.slane %v660, 1
    %v662 = vadd.f32 %v660, %v661
    %vm665 = vcmask 1041409
    %v666 = vsel %vm665, %v662, %v655
    %vm668 = vcmask 254976
    %669 = vst.msk [vmem:[#allocation9] sm:$0x3] %vm668, %v666
    %v672 = vlaneseq
    %v673 = vand.u32 %v672, 127
    %v674 = vlaneseq
    %v675 = vshrl.u32 %v674, 7
    %v676 = vsub.s32 %v673, %v675
    %v677 = vrot.slane %v628, %v676
    %v678 = vlaneseq
    %v679 = vshrl.u32 %v678, 7
    %v680 = vsub.s32 %v673, %v679
    %v681 = vrot.slane %v630, %v680
    %v682 = vsel %vm665, %v681, %v677
    %vm684 = vcmask 58368
    %685 = vst.msk [vmem:[#allocation10] sm:$0x3] %vm684, %v682
    // Predicated region
    $region38: #{tpu_custom_call.1} parent=1 // pred_check
      _
    $region39: #{tpu_custom_call.1} parent=1 // pred_check_branch
      %687 = sbr.rel (0) target = $region41
    $region40: #{tpu_custom_call.1} parent=1 // pred_region
      %s689 = ssub.s32 32, 32
      %690 = vsyncadd [#allocation5], %s689
      %s692 = sshll.u32 [#allocation9], 4
      %s693 = int_to_ptr.vmem [resolvable:$true] %s692
      %695 = dma.vmem_to_hbm [thread:$0]  %s693, 32, %s6, [#allocation5]
    $region41: #{tpu_custom_call.1} parent=1 // pred_fallthru
      _
    // Predicated region
    $region42: #{tpu_custom_call.1} parent=1 // pred_check
      _
    $region43: #{tpu_custom_call.1} parent=1 // pred_check_branch
      %697 = sbr.rel (0) target = $region45
    $region44: #{tpu_custom_call.1} parent=1 // pred_region
      %s699 = ssub.s32 32, 32
      %700 = vsyncadd [#allocation11], %s699
      %s702 = sshll.u32 [#allocation10], 4
      %s703 = int_to_ptr.vmem [resolvable:$true] %s702
      %705 = dma.vmem_to_hbm [thread:$0]  %s703, 32, %s7, [#allocation11]
    $region45: #{tpu_custom_call.1} parent=1 // pred_fallthru
      _
    // Predicated region
    $region46: #{tpu_custom_call.1} parent=1 // pred_check
      _
    $region47: #{tpu_custom_call.1} parent=1 // pred_check_branch
      %707 = sbr.rel (0) target = $region49
    $region48: #{tpu_custom_call.1} parent=1 // pred_region
      %708 = dma.done [#allocation5], 32
    $region49: #{tpu_custom_call.1} parent=1 // pred_fallthru
      _
    // Predicated region
    $region50: #{tpu_custom_call.1} parent=1 // pred_check
      _
    $region51: #{tpu_custom_call.1} parent=1 // pred_check_branch
      %710 = sbr.rel (0) target = $region53
    $region52: #{tpu_custom_call.1} parent=1 // pred_region
      %711 = dma.done [#allocation11], 32
    $region53: #{tpu_custom_call.1} parent=1 // pred_fallthru
      _
    %712 = vsyncpa [#allocation4], 1
    %713 = vsyncpa [#allocation7], 1
    %714 = vsyncpa [#allocation5], 1
    %715 = vsyncpa [#allocation11], 1

</llo_original>
